<compile_context>
chip_gen: v7x
topology: tpu7x:2x2x1
jax: 0.10.0
libtpu: 0.0.40
codegen_flags: <defaults>
</compile_context>

<pallas_src>
import functools

import jax
import jax.numpy as jnp
from jax.experimental import pallas as pl
from jax.experimental.pallas import tpu as pltpu


def _round_up(n, m):
    return ((n + m - 1) // m) * m


def _mlp_kernel(x_ref, w1_ref, b1_ref, w2_ref, b2_ref, o_ref):
    # Layer 1: Linear -> tanh (bf16 MXU operands, f32 accumulation).
    h = jnp.dot(x_ref[...], w1_ref[...], preferred_element_type=jnp.float32)
    h = jnp.tanh(h + b1_ref[...])
    # Layer 2: Linear -> sigmoid. sigmoid(z) == 0.5*(tanh(z/2)+1): a single
    # EUP tanh per element instead of exp + divide (EUP-friendly, exact math).
    z = jnp.dot(h.astype(jnp.bfloat16), w2_ref[...],
                preferred_element_type=jnp.float32)
    z = z + b2_ref[...]
    o_ref[...] = (0.5 * (jnp.tanh(0.5 * z) + 1.0)).astype(o_ref.dtype)


def prepare_params(w1, b1, w2, b2):
    """One-time parameter prep (hoisted out of the per-call path).

    Pads the hidden dim to a multiple of 128 (dense resident MXU tiles) and
    casts weights to bf16. Zero padding keeps the math exact: padded hidden
    units are tanh(0 + 0) applied to zero rows of W2's padded region... i.e.
    they contribute tanh(0)=0 * 0 = 0 to the output.
    """
    D_in, H = w1.shape
    D_out = w2.shape[1]
    H_p = _round_up(H, 128)
    w1p = jnp.zeros((D_in, H_p), jnp.bfloat16).at[:, :H].set(
        w1.astype(jnp.bfloat16))
    b1p = jnp.zeros((1, H_p), jnp.float32).at[:, :H].set(
        jnp.asarray(b1, jnp.float32).reshape(1, H))
    w2p = jnp.zeros((H_p, D_out), jnp.bfloat16).at[:H, :].set(
        w2.astype(jnp.bfloat16))
    b2p = jnp.asarray(b2, jnp.float32).reshape(1, D_out)
    return w1p, b1p, w2p, b2p


@functools.partial(jax.jit, static_argnames=("block_b",))
def mlp_forward(x, w1p, b1p, w2p, b2p, *, block_b=None):
    """x: [B, D_in] f32; pre-padded params from prepare_params()."""
    B, D_in = x.shape
    H_p = w1p.shape[1]
    D_out = w2p.shape[1]

    # Batch tile: multiple of 16 (bf16 sublane tile). Single grid step for
    # small/medium batches (no dead-row waste); 512-row tiles for large
    # batches (near HBM roofline, grid >= 2 engages both v7x TensorCores).
    if block_b is None:
        block_b = _round_up(B, 16) if B <= 1024 else 512
    B_p = _round_up(B, block_b)

    # x goes into the kernel as bf16 (halves the dominant HBM read stream).
    # No lane padding: last block dim == full array dim is legal; only the
    # batch is padded, by at most block_b-1 rows.
    xb = x.astype(jnp.bfloat16)
    if B_p != B:
        xb = jnp.zeros((B_p, D_in), jnp.bfloat16).at[:B].set(xb)

    grid = (B_p // block_b,)

    out = pl.pallas_call(
        _mlp_kernel,
        out_shape=jax.ShapeDtypeStruct((B_p, D_out), jnp.float32),
        grid=grid,
        in_specs=[
            pl.BlockSpec((block_b, D_in), lambda i: (i, 0)),   # x tile (bf16)
            pl.BlockSpec((D_in, H_p), lambda i: (0, 0)),       # W1 (resident)
            pl.BlockSpec((1, H_p), lambda i: (0, 0)),          # b1 (resident)
            pl.BlockSpec((H_p, D_out), lambda i: (0, 0)),      # W2 (resident)
            pl.BlockSpec((1, D_out), lambda i: (0, 0)),        # b2 (resident)
        ],
        out_specs=pl.BlockSpec((block_b, D_out), lambda i: (i, 0)),
        compiler_params=pltpu.CompilerParams(
            dimension_semantics=("parallel",),
            vmem_limit_bytes=32 * 1024 * 1024,
        ),
    )(xb, w1p, b1p, w2p, b2p)

    return out[:B] if B_p != B else out


def make_params(key, input_dim, hidden_size, output_dim):
    """Deterministic init mimicking torch.nn.Linear's U(-1/sqrt(fan_in), .)."""
    k1, k2, k3, k4 = jax.random.split(key, 4)
    bound1 = 1.0 / (input_dim ** 0.5)
    bound2 = 1.0 / (hidden_size ** 0.5)
    # Stored transposed relative to torch (torch Linear weight is [out, in]).
    w1 = jax.random.uniform(k1, (input_dim, hidden_size), jnp.float32, -bound1, bound1)
    b1 = jax.random.uniform(k2, (1, hidden_size), jnp.float32, -bound1, bound1)
    w2 = jax.random.uniform(k3, (hidden_size, output_dim), jnp.float32, -bound2, bound2)
    b2 = jax.random.uniform(k4, (1, output_dim), jnp.float32, -bound2, bound2)
    return w1, b1, w2, b2


def _ref(x, w1, b1, w2, b2):
    return jax.nn.sigmoid(jnp.tanh(x @ w1 + b1) @ w2 + b2)


if __name__ == "__main__":
    input_dim, hidden_size, output_dim = 32, 32, 16

    key = jax.random.PRNGKey(0)
    kx1, kp, kx2, kx3 = jax.random.split(key, 4)
    w1, b1, w2, b2 = make_params(kp, input_dim, hidden_size, output_dim)
    params = prepare_params(w1, b1, w2, b2)

    def _check(batch, kx):
        x = jax.random.normal(kx, (batch, input_dim), jnp.float32)
        out = mlp_forward(x, *params)
        jax.block_until_ready(out)
        ref = _ref(x, w1, b1, w2, b2)
        assert out.shape == (batch, output_dim), out.shape
        # bf16 matmul operands + f32 accumulation on a sigmoid-bounded output.
        assert jnp.allclose(out, ref, atol=2e-2, rtol=2e-2), float(
            jnp.max(jnp.abs(out - ref)))

    _check(8, kx1)      # toy size: single grid step, batch padded 8 -> 16
    _check(600, kx2)    # single grid step, batch padded 600 -> 608
    _check(1200, kx3)   # block_b=512, grid=3: exercises batch tiling / padding

    print("KERNEL_OK")
</pallas_src>

<mosaic_0001>
module attributes {stable_mosaic.version = 11 : i64} {
  func.func @_mlp_kernel(%arg0: i32, %arg1: memref<16x32xbf16, #tpu.memory_space<vmem>>, %arg2: memref<32x128xbf16, #tpu.memory_space<vmem>>, %arg3: memref<1x128xf32, #tpu.memory_space<vmem>>, %arg4: memref<128x16xbf16, #tpu.memory_space<vmem>>, %arg5: memref<1x16xf32, #tpu.memory_space<vmem>>, %arg6: memref<16x16xf32, #tpu.memory_space<vmem>>) attributes {dimension_semantics = [#tpu.dimension_semantics<parallel>], iteration_bounds = array<i64: 1>, scalar_prefetch = 0 : i64, scratch_operands = 0 : i64, tpu.core_type = #tpu.core_type<tc>, window_params = [{transform_indices = @transform_0, window_bounds = array<i64: 16, 32>}, {pipeline_mode = #tpu.pipeline_mode<synchronous>, transform_indices = @transform_1, window_bounds = array<i64: 32, 128>}, {pipeline_mode = #tpu.pipeline_mode<synchronous>, transform_indices = @transform_2, window_bounds = array<i64: 1, 128>}, {pipeline_mode = #tpu.pipeline_mode<synchronous>, transform_indices = @transform_3, window_bounds = array<i64: 128, 16>}, {pipeline_mode = #tpu.pipeline_mode<synchronous>, transform_indices = @transform_4, window_bounds = array<i64: 1, 16>}, {transform_indices = @transform_5, window_bounds = array<i64: 16, 16>}]} {
    %c0 = arith.constant 0 : index
    %c0_0 = arith.constant 0 : index
    %0 = vector.load %arg1[%c0, %c0_0] : memref<16x32xbf16, #tpu.memory_space<vmem>>, vector<16x32xbf16>
    %c0_1 = arith.constant 0 : index
    %c0_2 = arith.constant 0 : index
    %1 = vector.load %arg2[%c0_1, %c0_2] : memref<32x128xbf16, #tpu.memory_space<vmem>>, vector<32x128xbf16>
    %cst = arith.constant dense<0.000000e+00> : vector<16x128xf32>
    %2 = tpu.matmul %0, %1, %cst {dimension_numbers = #tpu.dot_dimension_numbers<[1], [0], [0], [1], [0, 0, 1, 1], [], []>} : vector<16x32xbf16>, vector<32x128xbf16>, vector<16x128xf32> -> vector<16x128xf32>
    %c0_3 = arith.constant 0 : index
    %c0_4 = arith.constant 0 : index
    %3 = vector.load %arg3[%c0_3, %c0_4] : memref<1x128xf32, #tpu.memory_space<vmem>>, vector<1x128xf32>
    %4 = vector.broadcast %3 : vector<1x128xf32> to vector<16x128xf32>
    %5 = arith.addf %2, %4 : vector<16x128xf32>
    %6 = math.tanh %5 : vector<16x128xf32>
    %7 = arith.truncf %6 : vector<16x128xf32> to vector<16x128xbf16>
    %c0_5 = arith.constant 0 : index
    %c0_6 = arith.constant 0 : index
    %8 = vector.load %arg4[%c0_5, %c0_6] : memref<128x16xbf16, #tpu.memory_space<vmem>>, vector<128x16xbf16>
    %cst_7 = arith.constant dense<0.000000e+00> : vector<16x16xf32>
    %9 = tpu.matmul %7, %8, %cst_7 {dimension_numbers = #tpu.dot_dimension_numbers<[1], [0], [0], [1], [0, 0, 1, 1], [], []>} : vector<16x128xbf16>, vector<128x16xbf16>, vector<16x16xf32> -> vector<16x16xf32>
    %c0_8 = arith.constant 0 : index
    %c0_9 = arith.constant 0 : index
    %10 = vector.load %arg5[%c0_8, %c0_9] : memref<1x16xf32, #tpu.memory_space<vmem>>, vector<1x16xf32>
    %11 = vector.broadcast %10 : vector<1x16xf32> to vector<16x16xf32>
    %12 = arith.addf %9, %11 : vector<16x16xf32>
    %cst_10 = arith.constant 5.000000e-01 : f32
    %13 = vector.broadcast %cst_10 : f32 to vector<16x16xf32>
    %14 = arith.mulf %13, %12 : vector<16x16xf32>
    %15 = math.tanh %14 : vector<16x16xf32>
    %cst_11 = arith.constant 1.000000e+00 : f32
    %16 = vector.broadcast %cst_11 : f32 to vector<16x16xf32>
    %17 = arith.addf %15, %16 : vector<16x16xf32>
    %cst_12 = arith.constant 5.000000e-01 : f32
    %18 = vector.broadcast %cst_12 : f32 to vector<16x16xf32>
    %19 = arith.mulf %18, %17 : vector<16x16xf32>
    %c0_13 = arith.constant 0 : index
    %c0_14 = arith.constant 0 : index
    %20 = vector.load %arg6[%c0_13, %c0_14] : memref<16x16xf32, #tpu.memory_space<vmem>>, vector<16x16xf32>
    tpu.vector_store %arg6[%c0_13, %c0_14], %19 {strides = array<i32>} : memref<16x16xf32, #tpu.memory_space<vmem>>, vector<16x16xf32>,
    return
  }
  func.func @transform_0(%arg0: i32) -> (i32, i32) {
    %c0_i32 = arith.constant 0 : i32
    %c0_i32_0 = arith.constant 0 : i32
    return %arg0, %c0_i32 : i32, i32
  }
  func.func @transform_1(%arg0: i32) -> (i32, i32) {
    %c0_i32 = arith.constant 0 : i32
    %c0_i32_0 = arith.constant 0 : i32
    %c0_i32_1 = arith.constant 0 : i32
    return %c0_i32, %c0_i32_0 : i32, i32
  }
  func.func @transform_2(%arg0: i32) -> (i32, i32) {
    %c0_i32 = arith.constant 0 : i32
    %c0_i32_0 = arith.constant 0 : i32
    %c0_i32_1 = arith.constant 0 : i32
    return %c0_i32, %c0_i32_0 : i32, i32
  }
  func.func @transform_3(%arg0: i32) -> (i32, i32) {
    %c0_i32 = arith.constant 0 : i32
    %c0_i32_0 = arith.constant 0 : i32
    %c0_i32_1 = arith.constant 0 : i32
    return %c0_i32, %c0_i32_0 : i32, i32
  }
  func.func @transform_4(%arg0: i32) -> (i32, i32) {
    %c0_i32 = arith.constant 0 : i32
    %c0_i32_0 = arith.constant 0 : i32
    %c0_i32_1 = arith.constant 0 : i32
    return %c0_i32, %c0_i32_0 : i32, i32
  }
  func.func @transform_5(%arg0: i32) -> (i32, i32) {
    %c0_i32 = arith.constant 0 : i32
    %c0_i32_0 = arith.constant 0 : i32
    return %arg0, %c0_i32 : i32, i32
  }
}

</mosaic_0001>

<llo_original>
// kernel: mlp_forward.1
$region0: #{mlp_forward.1}
  #allocation0 [shape = 'u32[]', space=smem, size = 0x4, offset = 0x4, fixed_abs, tag = 'smem constant byte address 0x4 - core index']
  #allocation1 [shape = 'u32[144,128]{1,0:T(1,128)}', space=vmem, size = 0x12000, scoped, tag = 'internal scratch']
  %s0 = inlined_call_operand.vmem [shape: bf16[16,32], index: 0, kind: input, shape index: {}]
  %s1 = inlined_call_operand.vmem [shape: bf16[32,128], index: 1, kind: input, shape index: {}]
  %s2 = inlined_call_operand.vmem [shape: f32[1,128], index: 2, kind: input, shape index: {}]
  %s3 = inlined_call_operand.vmem [shape: bf16[128,16], index: 3, kind: input, shape index: {}]
  %s4 = inlined_call_operand.vmem [shape: f32[1,16], index: 4, kind: input, shape index: {}]
  %s5 = inlined_call_operand.vmem [shape: f32[16,16], index: 5, kind: output, shape index: {}]
  %s6 = sld [smem:[#allocation0]]
  $region30: #{mlp_forward.1} parent=0
    _
  %s8 = ssub.s32 1, %s6
  %s9 = scalar_select 0, %s8, %s6
  // Predicated region
  $region2: #{mlp_forward.1} parent=0 // pred_check
    _
  $region3: #{mlp_forward.1} parent=0 // pred_check_branch
    %11 = sbr.rel (0) target = $region5
  $region4: #{mlp_forward.1} parent=0 // pred_region
    _
  $region5: #{mlp_forward.1} parent=0 // pred_fallthru
    _
  // Predicated region
  $region6: #{mlp_forward.1} parent=0 // pred_check
    _
  $region7: #{mlp_forward.1} parent=0 // pred_check_branch
    %13 = sbr.rel (0) target = $region9
  $region8: #{mlp_forward.1} parent=0 // pred_region
    _
  $region9: #{mlp_forward.1} parent=0 // pred_fallthru
    _
  // Predicated region
  $region10: #{mlp_forward.1} parent=0 // pred_check
    _
  $region11: #{mlp_forward.1} parent=0 // pred_check_branch
    %15 = sbr.rel (0) target = $region13
  $region12: #{mlp_forward.1} parent=0 // pred_region
    _
  $region13: #{mlp_forward.1} parent=0 // pred_fallthru
    _
  // Predicated region
  $region14: #{mlp_forward.1} parent=0 // pred_check
    _
  $region15: #{mlp_forward.1} parent=0 // pred_check_branch
    %17 = sbr.rel (0) target = $region17
  $region16: #{mlp_forward.1} parent=0 // pred_region
    _
  $region17: #{mlp_forward.1} parent=0 // pred_fallthru
    _
  // Predicated region
  $region18: #{mlp_forward.1} parent=0 // pred_check
    _
  $region19: #{mlp_forward.1} parent=0 // pred_check_branch
    %19 = sbr.rel (0) target = $region21
  $region20: #{mlp_forward.1} parent=0 // pred_region
    _
  $region21: #{mlp_forward.1} parent=0 // pred_fallthru
    _
  %v21 = vld [vmem:[%s0] sm:$0xf]
  %v22 = vld [vmem:[%s0 + $0x4] sm:$0xf]
  %v23 = vld [vmem:[%s1] sm:$0xf]
  %v24 = vld [vmem:[%s1 + $0x4] sm:$0xf]
  %v25 = vld [vmem:[%s1 + $0x8] sm:$0xf]
  %v26 = vld [vmem:[%s1 + $0xc] sm:$0xf]
  %v27 = vld [vmem:[%s2] sm:$0x1]
  %v29 = vlaneseq
  %v30 = vshrl.u32 %v29, 7
  %v31 = vsub.s32 0, %v30
  %v32 = vrot.slane %v27, %v31
  %v36 = vunpack.c.l.b16 %v21
  %v37 = vunpack.c.l.b16 %v22
  %v38 = vpack.c.b16 %v37, %v36
  %v43 = vunpack.c.l.b16 %v23
  %v44 = vunpack.c.l.b16 %v24
  %v45 = vunpack.c.l.b16 %v25
  %v46 = vunpack.c.l.b16 %v26
  %v47 = vpack.c.b16 %v44, %v43
  %v48 = vpack.c.b16 %v46, %v45
  %vm51 = vcmask 261120
  %v53 = vsel %vm51, %v38, 0
  %55 = vmatprep.subr.bf16.mxu0 0
  %56 = vmatpush1.bf16.msra.mxu0 %v47
  %57 = vmatprep.subr.bf16.mxu0 0
  %58 = vmatpush1.bf16.msra.mxu0 %v48
  %59 = vmatprep.subr.bf16.mxu0 0
  %60 = vmatpush1.bf16.msra.mxu0 0
  %61 = vmatprep.subr.bf16.mxu0 0
  %62 = vmatpush1.bf16.msra.mxu0 0
  %63 = vmatprep.subr.bf16.mxu0 0
  %64 = vmatpush1.bf16.msra.mxu0 0
  %65 = vmatprep.subr.bf16.mxu0 0
  %66 = vmatpush1.bf16.msra.mxu0 0
  %67 = vmatprep.subr.bf16.mxu0 0
  %68 = vmatpush1.bf16.msra.mxu0 0
  %69 = vmatprep.subr.bf16.mxu0 0
  %70 = vmatpush1.bf16.msra.mxu0 0
  %71 = vmatprep.subr.bf16.mxu0 0
  %72 = vmatpush1.bf16.msra.mxu0 0
  %73 = vmatprep.subr.bf16.mxu0 0
  %74 = vmatpush1.bf16.msra.mxu0 0
  %75 = vmatprep.subr.bf16.mxu0 0
  %76 = vmatpush1.bf16.msra.mxu0 0
  %77 = vmatprep.subr.bf16.mxu0 0
  %78 = vmatpush1.bf16.msra.mxu0 0
  %79 = vmatprep.subr.bf16.mxu0 0
  %80 = vmatpush1.bf16.msra.mxu0 0
  %81 = vmatprep.subr.bf16.mxu0 0
  %82 = vmatpush1.bf16.msra.mxu0 0
  %83 = vmatprep.subr.bf16.mxu0 0
  %84 = vmatpush1.bf16.msra.mxu0 0
  %85 = vmatprep.subr.bf16.mxu0 0
  %86 = vmatpush1.bf16.msra.mxu0 0
  %87 = vmatprep.mubr.bf16.mxu0 0
  %88 = vmatmul.mubr.bf16.gmra.mrb[0].mxu0 %v53
  %v89 = vpop.f32.mrb[0].mxu0
  %v90 = vadd.f32 %v32, %v89
  %v91 = vpop.f32.mrb[0].mxu0
  %v92 = vpop.f32.mrb[0].mxu0
  %v93 = vadd.f32 %v32, %v92
  %v94 = vpop.f32.mrb[0].mxu0
  %95 = vdwg.mxu0
  %v96 = vtanh.pop %v90
  %v97 = vtanh.pop %v93
  %v98 = vpack.c.bf16 %v97, %v96
  %v99 = vld [vmem:[%s3] sm:$0xf]
  %v100 = vld [vmem:[%s3 + $0x4] sm:$0xf]
  %v101 = vld [vmem:[%s3 + $0x8] sm:$0xf]
  %v102 = vld [vmem:[%s3 + $0xc] sm:$0xf]
  %v103 = vld [vmem:[%s3 + $0x10] sm:$0xf]
  %v104 = vld [vmem:[%s3 + $0x14] sm:$0xf]
  %v105 = vld [vmem:[%s3 + $0x18] sm:$0xf]
  %v106 = vld [vmem:[%s3 + $0x1c] sm:$0xf]
  %v107 = vld [vmem:[%s3 + $0x20] sm:$0xf]
  %v108 = vld [vmem:[%s3 + $0x24] sm:$0xf]
  %v109 = vld [vmem:[%s3 + $0x28] sm:$0xf]
  %v110 = vld [vmem:[%s3 + $0x2c] sm:$0xf]
  %v111 = vld [vmem:[%s3 + $0x30] sm:$0xf]
  %v112 = vld [vmem:[%s3 + $0x34] sm:$0xf]
  %v113 = vld [vmem:[%s3 + $0x38] sm:$0xf]
  %v114 = vld [vmem:[%s3 + $0x3c] sm:$0xf]
  %v115 = vld [vmem:[%s4] sm:$0x1]
  %v117 = vlaneseq
  %v118 = vshrl.u32 %v117, 7
  %v119 = vsub.s32 0, %v118
  %v120 = vrot.slane %v115, %v119
  %v138 = vunpack.c.l.b16 %v99
  %v139 = vunpack.c.l.b16 %v100
  %v140 = vunpack.c.l.b16 %v101
  %v141 = vunpack.c.l.b16 %v102
  %v142 = vunpack.c.l.b16 %v103
  %v143 = vunpack.c.l.b16 %v104
  %v144 = vunpack.c.l.b16 %v105
  %v145 = vunpack.c.l.b16 %v106
  %v146 = vunpack.c.l.b16 %v107
  %v147 = vunpack.c.l.b16 %v108
  %v148 = vunpack.c.l.b16 %v109
  %v149 = vunpack.c.l.b16 %v110
  %v150 = vunpack.c.l.b16 %v111
  %v151 = vunpack.c.l.b16 %v112
  %v152 = vunpack.c.l.b16 %v113
  %v153 = vunpack.c.l.b16 %v114
  %v154 = vpack.c.b16 %v139, %v138
  %v155 = vpack.c.b16 %v141, %v140
  %v156 = vpack.c.b16 %v143, %v142
  %v157 = vpack.c.b16 %v145, %v144
  %v158 = vpack.c.b16 %v147, %v146
  %v159 = vpack.c.b16 %v149, %v148
  %v160 = vpack.c.b16 %v151, %v150
  %v161 = vpack.c.b16 %v153, %v152
  %170 = vmatprep.subr.bf16.mxu0 0
  %171 = vmatpush1.bf16.msra.mxu0 %v154
  %172 = vmatprep.subr.bf16.mxu0 0
  %173 = vmatpush1.bf16.msra.mxu0 %v155
  %174 = vmatprep.subr.bf16.mxu0 0
  %175 = vmatpush1.bf16.msra.mxu0 %v156
  %176 = vmatprep.subr.bf16.mxu0 0
  %177 = vmatpush1.bf16.msra.mxu0 %v157
  %178 = vmatprep.subr.bf16.mxu0 0
  %179 = vmatpush1.bf16.msra.mxu0 %v158
  %180 = vmatprep.subr.bf16.mxu0 0
  %181 = vmatpush1.bf16.msra.mxu0 %v159
  %182 = vmatprep.subr.bf16.mxu0 0
  %183 = vmatpush1.bf16.msra.mxu0 %v160
  %184 = vmatprep.subr.bf16.mxu0 0
  %185 = vmatpush1.bf16.msra.mxu0 %v161
  %186 = vmatprep.subr.bf16.mxu0 0
  %187 = vmatpush1.bf16.msra.mxu0 0
  %188 = vmatprep.subr.bf16.mxu0 0
  %189 = vmatpush1.bf16.msra.mxu0 0
  %190 = vmatprep.subr.bf16.mxu0 0
  %191 = vmatpush1.bf16.msra.mxu0 0
  %192 = vmatprep.subr.bf16.mxu0 0
  %193 = vmatpush1.bf16.msra.mxu0 0
  %194 = vmatprep.subr.bf16.mxu0 0
  %195 = vmatpush1.bf16.msra.mxu0 0
  %196 = vmatprep.subr.bf16.mxu0 0
  %197 = vmatpush1.bf16.msra.mxu0 0
  %198 = vmatprep.subr.bf16.mxu0 0
  %199 = vmatpush1.bf16.msra.mxu0 0
  %200 = vmatprep.subr.bf16.mxu0 0
  %201 = vmatpush1.bf16.msra.mxu0 0
  %202 = vmatprep.mubr.bf16.mxu0 0
  %203 = vmatmul.mubr.bf16.gmra.mrb[0].mxu0 %v98
  %v204 = vpop.f32.mrb[0].mxu0
  %v205 = vadd.f32 %v120, %v204
  %v206 = vpop.f32.mrb[0].mxu0
  %v207 = vpop.f32.mrb[0].mxu0
  %v208 = vadd.f32 %v120, %v207
  %v209 = vpop.f32.mrb[0].mxu0
  %210 = vdwg.mxu0
  %v211 = vmul.f32 %v205, 0.5
  %v212 = vmul.f32 %v208, 0.5
  %v213 = vtanh.pop %v211
  %v214 = vtanh.pop %v212
  %v215 = vadd.f32 %v213, 1.0
  %v216 = vadd.f32 %v214, 1.0
  %v217 = vmul.f32 %v215, 0.5
  %v218 = vmul.f32 %v216, 0.5
  %vm219 = vcmask 130048
  %220 = vst.msk [vmem:[%s5] sm:$0xff] %vm219, %v217
  %221 = vst.msk [vmem:[%s5 + $0x8] sm:$0xff] %vm219, %v218
  // Predicated region
  $region22: #{mlp_forward.1} parent=0 // pred_check
    _
  $region23: #{mlp_forward.1} parent=0 // pred_check_branch
    %223 = sbr.rel (0) target = $region25
  $region24: #{mlp_forward.1} parent=0 // pred_region
    _
  $region25: #{mlp_forward.1} parent=0 // pred_fallthru
    _
  // Predicated region
  $region26: #{mlp_forward.1} parent=0 // pred_check
    _
  $region27: #{mlp_forward.1} parent=0 // pred_check_branch
    %225 = sbr.rel (0) target = $region29
  $region28: #{mlp_forward.1} parent=0 // pred_region
    _
  $region29: #{mlp_forward.1} parent=0 // pred_fallthru
    _

</llo_original>
